<compile_context>
chip_gen: v5e
topology: v5e:2x2
jax: 0.10.0
libtpu: 0.0.40
codegen_flags: <defaults>
</compile_context>

<pallas_src>
import functools

import jax
import jax.numpy as jnp
from jax.experimental import pallas as pl
from jax.experimental.pallas import tpu as pltpu

LANES = 128
MAX_BLOCK_ROWS = 2048   # (2048, 128) f32 = 1 MiB per input tile
MAX_SPLITS = 2          # per-core partial sums for v7x megacore; harmless on 1-TC chips


def _focal_kernel(pred_ref, true_ref, out_ref, acc_ref, *,
                  alpha, gamma, n_valid, block_rows):
    c = pl.program_id(0)                      # parallel split (maps to a TC on v7x)
    j = pl.program_id(1)                      # sequential blocks within a split
    blocks_per_split = pl.num_programs(1)

    @pl.when(j == 0)
    def _init():
        acc_ref[...] = jnp.zeros_like(acc_ref)

    x = pred_ref[...].astype(jnp.float32)     # logits
    y = true_ref[...].astype(jnp.float32)     # targets (float, possibly soft)

    # Stable BCE-with-logits: log(sigmoid(x)) = -softplus(-x),
    # log(1 - sigmoid(x)) = -softplus(x), softplus(t) = relu(t) + log(1 + e^-|t|).
    # Keep F.binary_cross_entropy's clamp of the log terms at -100.
    sp0 = jnp.log(1.0 + jnp.exp(-jnp.abs(x)))            # softplus(-|x|)  (1 exp + 1 log)
    softplus_px = sp0 + jnp.maximum(x, 0.0)              # softplus(x)
    softplus_nx = sp0 + jnp.maximum(-x, 0.0)             # softplus(-x)
    log_p = jnp.maximum(-softplus_nx, -100.0)            # log(sigmoid(x)), clamped
    log_1mp = jnp.maximum(-softplus_px, -100.0)          # log(1-sigmoid(x)), clamped
    bce = -(y * log_p + (1.0 - y) * log_1mp)

    pt = jnp.exp(-bce)                        # exact PyTorch semantics (soft targets too)
    one_m_pt = 1.0 - pt
    if gamma == 2.0:
        mod = one_m_pt * one_m_pt             # avoid jnp.power (exp+log) in the common case
    else:
        mod = jnp.power(one_m_pt, gamma)
    focal = (alpha * mod) * bce

    blk = c * blocks_per_split + j                       # logical block index
    block_start = blk * (block_rows * LANES)             # int32: fine for n < 2**31 elements
    block_end = block_start + block_rows * LANES

    @pl.when(block_end <= n_valid)                       # fully valid block: no masking
    def _acc_full():
        acc_ref[...] += focal

    @pl.when(block_end > n_valid)                        # tail / surplus block: mask by index
    def _acc_tail():
        rr = jax.lax.broadcasted_iota(jnp.int32, focal.shape, 0)
        ll = jax.lax.broadcasted_iota(jnp.int32, focal.shape, 1)
        gidx = block_start + rr * LANES + ll
        acc_ref[...] += jnp.where(gidx < n_valid, focal, 0.0)

    @pl.when(j == blocks_per_split - 1)
    def _finalize():
        out_ref[...] = jnp.reshape(jnp.sum(acc_ref[...]), (1, 1, 1))


def focal_loss(y_pred, y_true, alpha=0.25, gamma=2.0):
    """Pallas-TPU focal loss matching the PyTorch FocalLoss.forward()."""
    n = y_pred.size
    assert y_true.size == n

    if not jnp.issubdtype(y_true.dtype, jnp.floating):
        y_true = y_true.astype(jnp.float32)              # matches y_true.float()

    rem = n % LANES

    def _as_2d(a):
        flat = a.reshape(-1)
        if rem:                                          # only a <128-element ragged pad
            flat = jnp.pad(flat, (0, LANES - rem))
        return flat.reshape(-1, LANES)

    pred2d = _as_2d(y_pred)
    true2d = _as_2d(y_true)
    rows = pred2d.shape[0]

    block_rows = rows if rows <= MAX_BLOCK_ROWS else MAX_BLOCK_ROWS
    total_blocks = pl.cdiv(rows, block_rows)
    n_splits = min(MAX_SPLITS, total_blocks)
    blocks_per_split = pl.cdiv(total_blocks, n_splits)

    def in_map(c, j):
        blk = c * blocks_per_split + j
        # Surplus blocks are clamped onto the last real block; the kernel masks
        # their contribution to zero via the (unclamped) logical element index.
        return (jnp.minimum(blk, total_blocks - 1), 0)

    kernel = functools.partial(
        _focal_kernel, alpha=float(alpha), gamma=float(gamma),
        n_valid=n, block_rows=block_rows)

    partials = pl.pallas_call(
        kernel,
        out_shape=jax.ShapeDtypeStruct((n_splits, 1, 1), jnp.float32),
        grid_spec=pltpu.PrefetchScalarGridSpec(
            num_scalar_prefetch=0,
            grid=(n_splits, blocks_per_split),
            in_specs=[
                pl.BlockSpec((block_rows, LANES), in_map),
                pl.BlockSpec((block_rows, LANES), in_map),
            ],
            out_specs=pl.BlockSpec((1, 1, 1), lambda c, j: (c, 0, 0)),
            scratch_shapes=[pltpu.VMEM((block_rows, LANES), jnp.float32)],
        ),
        compiler_params=pltpu.CompilerParams(
            dimension_semantics=("parallel", "arbitrary"),
        ),
    )(pred2d, true2d)

    return jnp.sum(partials) / jnp.float32(n)


def _reference_focal_loss(y_pred, y_true, alpha=0.25, gamma=2.0):
    # Literal translation of the PyTorch module.
    y_true = y_true.astype(jnp.float32)
    p = jax.nn.sigmoid(y_pred.astype(jnp.float32))
    bce = -(y_true * jnp.maximum(jnp.log(p), -100.0)
            + (1.0 - y_true) * jnp.maximum(jnp.log(1.0 - p), -100.0))
    pt = jnp.exp(-bce)
    return jnp.mean(alpha * (1.0 - pt) ** gamma * bce)


if __name__ == "__main__":
    key = jax.random.PRNGKey(0)
    k1, k2, k3, k4 = jax.random.split(key, 4)

    # NCHW-style logits + binary targets (segmentation/detection head).
    y_pred = jax.random.normal(k1, (2, 4, 16, 16), dtype=jnp.float32)
    y_true = (jax.random.uniform(k2, (2, 4, 16, 16)) > 0.5).astype(jnp.float32)

    loss = jax.block_until_ready(focal_loss(y_pred, y_true, alpha=0.25, gamma=2.0))
    ref = _reference_focal_loss(y_pred, y_true, alpha=0.25, gamma=2.0)
    assert jnp.allclose(loss, ref, rtol=1e-5, atol=1e-6), (loss, ref)

    # Ragged size (n % 128 != 0) with soft targets exercises the minimal-pad
    # path and the in-kernel tail masking.
    y_pred2 = jax.random.normal(k3, (3, 5, 7), dtype=jnp.float32)
    y_true2 = jax.random.uniform(k4, (3, 5, 7), dtype=jnp.float32)
    loss2 = jax.block_until_ready(focal_loss(y_pred2, y_true2))
    ref2 = _reference_focal_loss(y_pred2, y_true2)
    assert jnp.allclose(loss2, ref2, rtol=1e-5, atol=1e-6), (loss2, ref2)

    print("KERNEL_OK")
</pallas_src>

<mosaic_0001>
module attributes {stable_mosaic.version = 11 : i64} {
  func.func @_focal_kernel(%arg0: i32, %arg1: i32, %arg2: memref<16x128xf32, #tpu.memory_space<vmem>>, %arg3: memref<16x128xf32, #tpu.memory_space<vmem>>, %arg4: memref<1x1x1xf32, #tpu.memory_space<vmem>>, %arg5: memref<16x128xf32, #tpu.memory_space<vmem>>) attributes {dimension_semantics = [#tpu.dimension_semantics<parallel>, #tpu.dimension_semantics<arbitrary>], iteration_bounds = array<i64: 1, 1>, scalar_prefetch = 0 : i64, scratch_operands = 1 : i64, tpu.core_type = #tpu.core_type<tc>, window_params = [{transform_indices = @transform_0, window_bounds = array<i64: 16, 128>}, {transform_indices = @transform_1, window_bounds = array<i64: 16, 128>}, {transform_indices = @transform_2, window_bounds = array<i64: 1, 1, 1>}]} {
    %c0_i32 = arith.constant 0 : i32
    %0 = arith.cmpi eq, %arg1, %c0_i32 : i32
    %1 = arith.extui %0 : i1 to i32
    %c0_i32_0 = arith.constant 0 : i32
    %2 = arith.cmpi ne, %1, %c0_i32_0 : i32
    scf.if %2 {
      %cst_24 = arith.constant 0.000000e+00 : f32
      %57 = vector.broadcast %cst_24 : f32 to vector<16x128xf32>
      %c0_25 = arith.constant 0 : index
      %c0_26 = arith.constant 0 : index
      %58 = vector.load %arg5[%c0_25, %c0_26] : memref<16x128xf32, #tpu.memory_space<vmem>>, vector<16x128xf32>
      tpu.vector_store %arg5[%c0_25, %c0_26], %57 {strides = array<i32>} : memref<16x128xf32, #tpu.memory_space<vmem>>, vector<16x128xf32>,
    } else {
    }
    %c0 = arith.constant 0 : index
    %c0_1 = arith.constant 0 : index
    %3 = vector.load %arg2[%c0, %c0_1] : memref<16x128xf32, #tpu.memory_space<vmem>>, vector<16x128xf32>
    %c0_2 = arith.constant 0 : index
    %c0_3 = arith.constant 0 : index
    %4 = vector.load %arg3[%c0_2, %c0_3] : memref<16x128xf32, #tpu.memory_space<vmem>>, vector<16x128xf32>
    %5 = math.absf %3 : vector<16x128xf32>
    %cst = arith.constant 0.000000e+00 : f32
    %6 = vector.broadcast %cst : f32 to vector<16x128xf32>
    %7 = arith.subf %6, %5 : vector<16x128xf32>
    %8 = math.exp %7 : vector<16x128xf32>
    %cst_4 = arith.constant 1.000000e+00 : f32
    %9 = vector.broadcast %cst_4 : f32 to vector<16x128xf32>
    %10 = arith.addf %9, %8 : vector<16x128xf32>
    %11 = math.log %10 : vector<16x128xf32>
    %cst_5 = arith.constant 0.000000e+00 : f32
    %12 = vector.broadcast %cst_5 : f32 to vector<16x128xf32>
    %13 = arith.maximumf %3, %12 : vector<16x128xf32>
    %14 = arith.addf %11, %13 : vector<16x128xf32>
    %cst_6 = arith.constant 0.000000e+00 : f32
    %15 = vector.broadcast %cst_6 : f32 to vector<16x128xf32>
    %16 = arith.subf %15, %3 : vector<16x128xf32>
    %cst_7 = arith.constant 0.000000e+00 : f32
    %17 = vector.broadcast %cst_7 : f32 to vector<16x128xf32>
    %18 = arith.maximumf %16, %17 : vector<16x128xf32>
    %19 = arith.addf %11, %18 : vector<16x128xf32>
    %cst_8 = arith.constant 0.000000e+00 : f32
    %20 = vector.broadcast %cst_8 : f32 to vector<16x128xf32>
    %21 = arith.subf %20, %19 : vector<16x128xf32>
    %cst_9 = arith.constant -1.000000e+02 : f32
    %22 = vector.broadcast %cst_9 : f32 to vector<16x128xf32>
    %23 = arith.maximumf %21, %22 : vector<16x128xf32>
    %cst_10 = arith.constant 0.000000e+00 : f32
    %24 = vector.broadcast %cst_10 : f32 to vector<16x128xf32>
    %25 = arith.subf %24, %14 : vector<16x128xf32>
    %cst_11 = arith.constant -1.000000e+02 : f32
    %26 = vector.broadcast %cst_11 : f32 to vector<16x128xf32>
    %27 = arith.maximumf %25, %26 : vector<16x128xf32>
    %28 = arith.mulf %4, %23 : vector<16x128xf32>
    %cst_12 = arith.constant 1.000000e+00 : f32
    %29 = vector.broadcast %cst_12 : f32 to vector<16x128xf32>
    %30 = arith.subf %29, %4 : vector<16x128xf32>
    %31 = arith.mulf %30, %27 : vector<16x128xf32>
    %32 = arith.addf %28, %31 : vector<16x128xf32>
    %cst_13 = arith.constant 0.000000e+00 : f32
    %33 = vector.broadcast %cst_13 : f32 to vector<16x128xf32>
    %34 = arith.subf %33, %32 : vector<16x128xf32>
    %cst_14 = arith.constant 0.000000e+00 : f32
    %35 = vector.broadcast %cst_14 : f32 to vector<16x128xf32>
    %36 = arith.subf %35, %34 : vector<16x128xf32>
    %37 = math.exp %36 : vector<16x128xf32>
    %cst_15 = arith.constant 1.000000e+00 : f32
    %38 = vector.broadcast %cst_15 : f32 to vector<16x128xf32>
    %39 = arith.subf %38, %37 : vector<16x128xf32>
    %40 = arith.mulf %39, %39 : vector<16x128xf32>
    %cst_16 = arith.constant 2.500000e-01 : f32
    %41 = vector.broadcast %cst_16 : f32 to vector<16x128xf32>
    %42 = arith.mulf %41, %40 : vector<16x128xf32>
    %43 = arith.mulf %42, %34 : vector<16x128xf32>
    %c1_i32 = arith.constant 1 : i32
    %44 = arith.muli %arg0, %c1_i32 : i32
    %45 = arith.addi %44, %arg1 : i32
    %c2048_i32 = arith.constant 2048 : i32
    %46 = arith.muli %45, %c2048_i32 : i32
    %c2048_i32_17 = arith.constant 2048 : i32
    %47 = arith.addi %46, %c2048_i32_17 : i32
    %c2048_i32_18 = arith.constant 2048 : i32
    %48 = arith.cmpi sle, %47, %c2048_i32_18 : i32
    %49 = arith.extui %48 : i1 to i32
    %c0_i32_19 = arith.constant 0 : i32
    %50 = arith.cmpi ne, %49, %c0_i32_19 : i32
    scf.if %50 {
      %c0_24 = arith.constant 0 : index
      %c0_25 = arith.constant 0 : index
      %57 = vector.load %arg5[%c0_24, %c0_25] : memref<16x128xf32, #tpu.memory_space<vmem>>, vector<16x128xf32>
      %58 = arith.addf %57, %43 : vector<16x128xf32>
      %c0_26 = arith.constant 0 : index
      %c0_27 = arith.constant 0 : index
      %59 = vector.load %arg5[%c0_26, %c0_27] : memref<16x128xf32, #tpu.memory_space<vmem>>, vector<16x128xf32>
      tpu.vector_store %arg5[%c0_26, %c0_27], %58 {strides = array<i32>} : memref<16x128xf32, #tpu.memory_space<vmem>>, vector<16x128xf32>,
    } else {
    }
    %c2048_i32_20 = arith.constant 2048 : i32
    %51 = arith.cmpi sgt, %47, %c2048_i32_20 : i32
    %52 = arith.extui %51 : i1 to i32
    %c0_i32_21 = arith.constant 0 : i32
    %53 = arith.cmpi ne, %52, %c0_i32_21 : i32
    scf.if %53 {
      %57 = tpu.iota {dimensions = array<i32: 0>} : vector<16x128xi32>
      %58 = tpu.iota {dimensions = array<i32: 1>} : vector<16x128xi32>
      %c128_i32 = arith.constant 128 : i32
      %59 = vector.broadcast %c128_i32 : i32 to vector<16x128xi32>
      %60 = arith.muli %57, %59 : vector<16x128xi32>
      %61 = vector.broadcast %46 : i32 to vector<16x128xi32>
      %62 = arith.addi %61, %60 : vector<16x128xi32>
      %63 = arith.addi %62, %58 : vector<16x128xi32>
      %c0_24 = arith.constant 0 : index
      %c0_25 = arith.constant 0 : index
      %64 = vector.load %arg5[%c0_24, %c0_25] : memref<16x128xf32, #tpu.memory_space<vmem>>, vector<16x128xf32>
      %c2048_i32_26 = arith.constant 2048 : i32
      %65 = vector.broadcast %c2048_i32_26 : i32 to vector<16x128xi32>
      %66 = arith.cmpi slt, %63, %65 : vector<16x128xi32>
      %cst_27 = arith.constant 0.000000e+00 : f32
      %67 = vector.broadcast %cst_27 : f32 to vector<16x128xf32>
      %68 = arith.select %66, %43, %67 : vector<16x128xi1>, vector<16x128xf32>
      %69 = arith.addf %64, %68 : vector<16x128xf32>
      %c0_28 = arith.constant 0 : index
      %c0_29 = arith.constant 0 : index
      %70 = vector.load %arg5[%c0_28, %c0_29] : memref<16x128xf32, #tpu.memory_space<vmem>>, vector<16x128xf32>
      tpu.vector_store %arg5[%c0_28, %c0_29], %69 {strides = array<i32>} : memref<16x128xf32, #tpu.memory_space<vmem>>, vector<16x128xf32>,
    } else {
    }
    %c0_i32_22 = arith.constant 0 : i32
    %54 = arith.cmpi eq, %arg1, %c0_i32_22 : i32
    %55 = arith.extui %54 : i1 to i32
    %c0_i32_23 = arith.constant 0 : i32
    %56 = arith.cmpi ne, %55, %c0_i32_23 : i32
    scf.if %56 {
      %c0_24 = arith.constant 0 : index
      %c0_25 = arith.constant 0 : index
      %57 = vector.load %arg5[%c0_24, %c0_25] : memref<16x128xf32, #tpu.memory_space<vmem>>, vector<16x128xf32>
      %58 = vector.shape_cast %57 : vector<16x128xf32> to vector<1x16x128xf32>
      %cst_26 = arith.constant dense<0.000000e+00> : vector<1xf32>
      %59 = vector.multi_reduction <add>, %58, %cst_26 [1, 2] : vector<1x16x128xf32> to vector<1xf32>
      %60 = vector.shape_cast %59 : vector<1xf32> to vector<1x1x1xf32>
      %61 = vector.extract %60[0, 0, 0] : f32 from vector<1x1x1xf32>
      %62 = vector.broadcast %61 : f32 to vector<1x1x1xf32>
      %c0_27 = arith.constant 0 : index
      %c0_28 = arith.constant 0 : index
      %c0_29 = arith.constant 0 : index
      %63 = vector.load %arg4[%c0_27, %c0_28, %c0_29] : memref<1x1x1xf32, #tpu.memory_space<vmem>>, vector<1x1x1xf32>
      tpu.vector_store %arg4[%c0_27, %c0_28, %c0_29], %62 {strides = array<i32>} : memref<1x1x1xf32, #tpu.memory_space<vmem>>, vector<1x1x1xf32>,
    } else {
    }
    return
  }
  func.func @transform_0(%arg0: i32, %arg1: i32) -> (i32, i32) {
    %c1_i32 = arith.constant 1 : i32
    %0 = arith.muli %arg0, %c1_i32 : i32
    %1 = arith.addi %0, %arg1 : i32
    %c0_i32 = arith.constant 0 : i32
    %2 = arith.minsi %1, %c0_i32 : i32
    %c0_i32_0 = arith.constant 0 : i32
    %c0_i32_1 = arith.constant 0 : i32
    return %2, %c0_i32_0 : i32, i32
  }
  func.func @transform_1(%arg0: i32, %arg1: i32) -> (i32, i32) {
    %c1_i32 = arith.constant 1 : i32
    %0 = arith.muli %arg0, %c1_i32 : i32
    %1 = arith.addi %0, %arg1 : i32
    %c0_i32 = arith.constant 0 : i32
    %2 = arith.minsi %1, %c0_i32 : i32
    %c0_i32_0 = arith.constant 0 : i32
    %c0_i32_1 = arith.constant 0 : i32
    return %2, %c0_i32_0 : i32, i32
  }
  func.func @transform_2(%arg0: i32, %arg1: i32) -> (i32, i32, i32) {
    %c0_i32 = arith.constant 0 : i32
    %c0_i32_0 = arith.constant 0 : i32
    %c0_i32_1 = arith.constant 0 : i32
    return %arg0, %c0_i32, %c0_i32_0 : i32, i32, i32
  }
}

</mosaic_0001>

<llo_original>
// kernel: tpu_custom_call.1
$region0: #{tpu_custom_call.1}
  #allocation0 [shape = 'u32[]', space=smem, size = 0x4, offset = 0x4, fixed_abs, tag = 'smem constant byte address 0x4 - core index']
  #allocation1 [shape = 'u32[72,128]{1,0:T(1,128)}', space=vmem, size = 0x9000, scoped, tag = 'internal scratch']
  #allocation2 [shape = 'f32[16,128]{1,0:T(8,128)}', space=vmem, size = 0x2000, scoped, tag = 'scratch operand']
  %s0 = inlined_call_operand.hbm [shape: f32[16,128], index: 0, kind: input, shape index: {}]
  %s1 = inlined_call_operand.hbm [shape: f32[16,128], index: 1, kind: input, shape index: {}]
  %s2 = inlined_call_operand.hbm [shape: f32[1,1,1], index: 2, kind: output, shape index: {}]
  %s3 = sld [smem:[#allocation0]]
  $region42: #{tpu_custom_call.1} parent=0
    _
  %s5 = ssub.s32 1, %s3
  %s6 = scalar_select 0, %s5, %s3
  $region1: #{tpu_custom_call.1} parent=0
    #allocation3 [shape = 'u8[8192]{0}', space=vmem, size = 0x2000, scoped, tag = 'input window, operand 0, single buffered']
    #allocation4 [shape = 's32[1]{0}', space=sflag, size = 0x4, scoped, tag = 'scoped memory for tpu_custom_call.1']
    #allocation5 [shape = 's32[1]{0}', space=sflag, size = 0x4, scoped, tag = 'scoped memory for tpu_custom_call.1']
    #allocation6 [shape = 'u8[8192]{0}', space=vmem, size = 0x2000, scoped, tag = 'input window, operand 1, single buffered']
    #allocation7 [shape = 's32[1]{0}', space=sflag, size = 0x4, scoped, tag = 'scoped memory for tpu_custom_call.1']
    #allocation8 [shape = 'u8[512]{0}', space=vmem, size = 0x400, scoped, tag = 'output window, operand 0, single buffered']
    %7 = vsyncpa [#allocation4], 0
    %8 = vsyncpa [#allocation7], 0
    %9 = vsyncpa [#allocation5], 0
    // Predicated region
    $region2: #{tpu_custom_call.1} parent=1 // pred_check
      _
    $region3: #{tpu_custom_call.1} parent=1 // pred_check_branch
      %11 = sbr.rel (0) target = $region5
    $region4: #{tpu_custom_call.1} parent=1 // pred_region
      %s12 = sadd.s32 0, 0
      %p13 = scmp.lt.s32.totalorder %s12, 0
      %s14 = scalar_select %p13, %s12, 0
      %s15 = smul.u32 2, %s14
      %17 = vsyncadd [#allocation4], 0
      %s18 = smul.addr %s15, 8
      %s19 = scalar_lea.hbm %s0, %s18
      %s20 = sshll.u32 %s19, 4
      %s21 = int_to_ptr.hbm [resolvable:$true] %s20
      %s22 = sshll.u32 [#allocation3], 4
      %s23 = int_to_ptr.vmem [resolvable:$true] %s22
      %28 = dma.hbm_to_vmem [thread:$0]  %s21, 256, %s23, [#allocation4], 128, 128, 8
    $region5: #{tpu_custom_call.1} parent=1 // pred_fallthru
      _
    // Predicated region
    $region6: #{tpu_custom_call.1} parent=1 // pred_check
      _
    $region7: #{tpu_custom_call.1} parent=1 // pred_check_branch
      %30 = sbr.rel (0) target = $region9
    $region8: #{tpu_custom_call.1} parent=1 // pred_region
      %s31 = sadd.s32 0, 0
      %p32 = scmp.lt.s32.totalorder %s31, 0
      %s33 = scalar_select %p32, %s31, 0
      %s34 = smul.u32 2, %s33
      %36 = vsyncadd [#allocation7], 0
      %s37 = smul.addr %s34, 8
      %s38 = scalar_lea.hbm %s1, %s37
      %s39 = sshll.u32 %s38, 4
      %s40 = int_to_ptr.hbm [resolvable:$true] %s39
      %s41 = sshll.u32 [#allocation6], 4
      %s42 = int_to_ptr.vmem [resolvable:$true] %s41
      %47 = dma.hbm_to_vmem [thread:$0]  %s40, 256, %s42, [#allocation7], 128, 128, 8
    $region9: #{tpu_custom_call.1} parent=1 // pred_fallthru
      _
    // Predicated region
    $region10: #{tpu_custom_call.1} parent=1 // pred_check
      _
    $region11: #{tpu_custom_call.1} parent=1 // pred_check_branch
      %49 = sbr.rel (0) target = $region13
    $region12: #{tpu_custom_call.1} parent=1 // pred_region
      %51 = dma.done [#allocation4], 256
    $region13: #{tpu_custom_call.1} parent=1 // pred_fallthru
      _
    // Predicated region
    $region14: #{tpu_custom_call.1} parent=1 // pred_check
      _
    $region15: #{tpu_custom_call.1} parent=1 // pred_check_branch
      %53 = sbr.rel (0) target = $region17
    $region16: #{tpu_custom_call.1} parent=1 // pred_region
      %55 = dma.done [#allocation7], 256
    $region17: #{tpu_custom_call.1} parent=1 // pred_fallthru
      _
    %s56 = sadd.s32 0, 0
    %p57 = scmp.lt.s32.totalorder %s56, 0
    %s58 = scalar_select %p57, %s56, 0
    %s59 = smul.u32 2, %s58
    %s60 = sadd.s32 0, 0
    %p61 = scmp.lt.s32.totalorder %s60, 0
    %s62 = scalar_select %p61, %s60, 0
    %s63 = smul.u32 2, %s62
    %p64 = scmp.eq.s32.totalorder 0, 0
    // Predicated region
    $region18: #{tpu_custom_call.1} parent=1 // pred_check
      %p65 = pneg %p64
    $region19: #{tpu_custom_call.1} parent=1 // pred_check_branch
      %67 = sbr.rel (%p65) target = $region21
    $region20: #{tpu_custom_call.1} parent=1 // pred_region
      %68 = vst [vmem:[#allocation2] sm:$0xff] 0.0
      %69 = vst [vmem:[#allocation2 + $0x8] sm:$0xff] 0.0
    $region21: #{tpu_custom_call.1} parent=1 // pred_fallthru
      _
    %v70 = vld [vmem:[#allocation3] sm:$0xff]
    %v71 = vld [vmem:[#allocation3 + $0x8] sm:$0xff]
    %v72 = vld [vmem:[#allocation6] sm:$0xff]
    %v73 = vld [vmem:[#allocation6 + $0x8] sm:$0xff]
    %v74 = vand.u32 2147483647, %v70
    %v75 = vand.u32 2147483647, %v71
    %v76 = vsub.f32 0.0, %v74
    %v77 = vsub.f32 0.0, %v75
    %v78 = vmul.f32 %v76, 1.442695
    %v79 = vpow.pop %v78
    %v80 = vmul.f32 %v77, 1.442695
    %v81 = vpow.pop %v80
    %v82 = vadd.f32 %v79, 1.0
    %v83 = vadd.f32 %v81, 1.0
    %v84 = vlog2.pop %v82
    %v85 = vmul.f32 %v84, 0.6931472
    %v86 = vlog2.pop %v83
    %v87 = vmul.f32 %v86, 0.6931472
    %v88 = vmax.f32 %v70, 0.0
    %v89 = vmax.f32 %v71, 0.0
    %v90 = vadd.f32 %v85, %v88
    %v91 = vadd.f32 %v87, %v89
    %v92 = vsub.f32 0.0, %v70
    %v93 = vsub.f32 0.0, %v71
    %v94 = vmax.f32 %v92, 0.0
    %v95 = vmax.f32 %v93, 0.0
    %v96 = vadd.f32 %v85, %v94
    %v97 = vadd.f32 %v87, %v95
    %v98 = vsub.f32 0.0, %v96
    %v99 = vsub.f32 0.0, %v97
    %v100 = vmax.f32 %v98, -100.0
    %v101 = vmax.f32 %v99, -100.0
    %v102 = vsub.f32 0.0, %v90
    %v103 = vsub.f32 0.0, %v91
    %v104 = vmax.f32 %v102, -100.0
    %v105 = vmax.f32 %v103, -100.0
    %v106 = vmul.f32 %v72, %v100
    %v107 = vmul.f32 %v73, %v101
    %v108 = vsub.f32 1.0, %v72
    %v109 = vsub.f32 1.0, %v73
    %v110 = vmul.f32 %v108, %v104
    %v111 = vmul.f32 %v109, %v105
    %v112 = vadd.f32 %v106, %v110
    %v113 = vadd.f32 %v107, %v111
    %v114 = vsub.f32 0.0, %v112
    %v115 = vsub.f32 0.0, %v113
    %v116 = vsub.f32 0.0, %v114
    %v117 = vsub.f32 0.0, %v115
    %v118 = vmul.f32 %v116, 1.442695
    %v119 = vpow.pop %v118
    %v120 = vmul.f32 %v117, 1.442695
    %v121 = vpow.pop %v120
    %v122 = vsub.f32 1.0, %v119
    %v123 = vsub.f32 1.0, %v121
    %v124 = vmul.f32 %v122, %v122
    %v125 = vmul.f32 %v123, %v123
    %v126 = vmul.f32 %v124, 0.25
    %v127 = vmul.f32 %v125, 0.25
    %v128 = vmul.f32 %v126, %v114
    %v129 = vmul.f32 %v127, %v115
    %s130 = sadd.s32 0, 0
    %s131 = smul.u32 %s130, 2048
    %s132 = sadd.s32 %s131, 2048
    %p133 = scmp.le.s32.totalorder %s132, 2048
    // Predicated region
    $region22: #{tpu_custom_call.1} parent=1 // pred_check
      %p134 = pneg %p133
    $region23: #{tpu_custom_call.1} parent=1 // pred_check_branch
      %136 = sbr.rel (%p134) target = $region25
    $region24: #{tpu_custom_call.1} parent=1 // pred_region
      %v137 = vld [vmem:[#allocation2] sm:$0xff]
      %v138 = vld [vmem:[#allocation2 + $0x8] sm:$0xff]
      %v139 = vadd.f32 %v137, %v128
      %v140 = vadd.f32 %v138, %v129
      %141 = vst [vmem:[#allocation2] sm:$0xff] %v139
      %142 = vst [vmem:[#allocation2 + $0x8] sm:$0xff] %v140
    $region25: #{tpu_custom_call.1} parent=1 // pred_fallthru
      _
    %p143 = scmp.gt.s32.totalorder %s132, 2048
    // Predicated region
    $region26: #{tpu_custom_call.1} parent=1 // pred_check
      %p144 = pneg %p143
    $region27: #{tpu_custom_call.1} parent=1 // pred_check_branch
      %146 = sbr.rel (%p144) target = $region29
    $region28: #{tpu_custom_call.1} parent=1 // pred_region
      %v147 = vlaneseq
      %v148 = vshrl.u32 %v147, 7
      %v149 = vadd.s32 %v148, 8
      %v150 = vlaneseq
      %v151 = vand.u32 %v150, 127
      %v152 = vmul.u32 %v148, 128
      %v153 = vmul.u32 %v149, 128
      %v154 = vstv %s131
      %v155 = vadd.s32 %v154, %v152
      %v156 = vadd.s32 %v154, %v153
      %v157 = vadd.s32 %v155, %v151
      %v158 = vadd.s32 %v156, %v151
      %v159 = vld [vmem:[#allocation2] sm:$0xff]
      %v160 = vld [vmem:[#allocation2 + $0x8] sm:$0xff]
      %vm161 = vcmp.lt.s32.totalorder %v157, 2048
      %vm162 = vcmp.lt.s32.totalorder %v158, 2048
      %v163 = vsel %vm161, %v128, 0.0
      %v164 = vsel %vm162, %v129, 0.0
      %v165 = vadd.f32 %v159, %v163
      %v166 = vadd.f32 %v160, %v164
      %167 = vst [vmem:[#allocation2] sm:$0xff] %v165
      %168 = vst [vmem:[#allocation2 + $0x8] sm:$0xff] %v166
    $region29: #{tpu_custom_call.1} parent=1 // pred_fallthru
      _
    // Predicated region
    $region30: #{tpu_custom_call.1} parent=1 // pred_check
      %p169 = pneg %p64
    $region31: #{tpu_custom_call.1} parent=1 // pred_check_branch
      %171 = sbr.rel (%p169) target = $region33
    $region32: #{tpu_custom_call.1} parent=1 // pred_region
      %v172 = vld [vmem:[#allocation2] sm:$0xff]
      %v173 = vld [vmem:[#allocation2 + $0x8] sm:$0xff]
      %v174 = vadd.f32 %v172, %v173
      %175 = vadd.xlane.f32.xlu0 %v174
      %v176 = vpop.xlane.xlu0 %175
      %v177 = vrot.slane %v176, 4
      %v178 = vadd.f32 %v176, %v177
      %v179 = vrot.slane %v178, 2
      %v180 = vadd.f32 %v178, %v179
      %v181 = vrot.slane %v180, 1
      %v182 = vadd.f32 %v180, %v181
      %s183 = vtos %v182
      %v184 = vstv %s183
      %vm185 = vcmask 0
      %186 = vst.msk [vmem:[#allocation8] sm:$0x1] %vm185, %v184
    $region33: #{tpu_custom_call.1} parent=1 // pred_fallthru
      _
    // Predicated region
    $region34: #{tpu_custom_call.1} parent=1 // pred_check
      _
    $region35: #{tpu_custom_call.1} parent=1 // pred_check_branch
      %188 = sbr.rel (0) target = $region37
    $region36: #{tpu_custom_call.1} parent=1 // pred_region
      %190 = vsyncadd [#allocation5], 0
      %s192 = sshll.u32 [#allocation8], 4
      %s193 = int_to_ptr.vmem [resolvable:$true] %s192
      %s194 = sshll.u32 %s2, 4
      %s195 = int_to_ptr.hbm [resolvable:$true] %s194
      %197 = dma.vmem_to_hbm [thread:$0]  %s193, 16, %s195, [#allocation5]
    $region37: #{tpu_custom_call.1} parent=1 // pred_fallthru
      _
    // Predicated region
    $region38: #{tpu_custom_call.1} parent=1 // pred_check
      _
    $region39: #{tpu_custom_call.1} parent=1 // pred_check_branch
      %199 = sbr.rel (0) target = $region41
    $region40: #{tpu_custom_call.1} parent=1 // pred_region
      %201 = dma.done [#allocation5], 16
    $region41: #{tpu_custom_call.1} parent=1 // pred_fallthru
      _
    %202 = vsyncpa [#allocation4], 1
    %203 = vsyncpa [#allocation7], 1
    %204 = vsyncpa [#allocation5], 1

</llo_original>
